<compile_context>
chip_gen: v7x
topology: tpu7x:2x2x1
jax: 0.10.0
libtpu: 0.0.40
codegen_flags: <defaults>
</compile_context>

<pallas_src>
import jax
import jax.numpy as jnp
from jax.experimental import pallas as pl
from jax.experimental.pallas import tpu as pltpu


def mlp_sp_kernel(x_ref, w1_ref, b1_ref, w2_ref, b2_ref, o_ref):
    # fc1: (TM, I) @ (I, H) on the MXU, f32 accumulation.
    h = jnp.dot(x_ref[...], w1_ref[...], preferred_element_type=jnp.float32)
    h = jnp.tanh(h + b1_ref[...])                     # bias broadcast + EUP tanh (f32)
    # fc2: (TM, H) @ (H, O), f32 accumulation (cast activations to weight dtype
    # so a bf16 weight path still feeds the MXU in bf16).
    z = jnp.dot(h.astype(w2_ref.dtype), w2_ref[...],
                preferred_element_type=jnp.float32)
    z = z + b2_ref[...]
    # Numerically stable softplus: max(z, 0) + log1p(exp(-|z|))  (== nn.Softplus).
    sp = jnp.maximum(z, 0.0) + jnp.log1p(jnp.exp(-jnp.abs(z)))
    o_ref[...] = sp.astype(o_ref.dtype)


def _round_up(n, m):
    return pl.cdiv(n, m) * m


def mlp_sp(x, w1, b1, w2, b2, *, block_rows=4096, compute_dtype=jnp.float32):
    """Forward pass of MLP_SP: softplus(tanh(x @ w1.T + b1) @ w2.T + b2).

    x: (B, I); w1: (H, I); b1: (H,); w2: (O, H); b2: (O,)   (PyTorch layout).
    compute_dtype: dtype used for x and weights (f32 or bf16); accumulation and
    activation math are always f32.
    """
    B, I = x.shape
    H = w1.shape[0]
    O = w2.shape[0]
    compute_dtype = jnp.dtype(compute_dtype)

    # Pre-transpose weights to (in, out) and shape biases as (1, out) rows.
    # TODO(synk): in a real model, cache these transposed/cast parameters once
    # instead of re-deriving them every call.
    w1_t = jnp.asarray(w1, compute_dtype).T            # (I, H)
    w2_t = jnp.asarray(w2, compute_dtype).T            # (H, O)
    b1_r = jnp.asarray(b1, jnp.float32).reshape(1, H)  # (1, H)
    b2_r = jnp.asarray(b2, jnp.float32).reshape(1, O)  # (1, O)
    x_c = jnp.asarray(x, compute_dtype)

    # Batch tile: multiple of the sublane packing (8 for f32, 16 for bf16),
    # capped at block_rows.  Pad B up to a multiple of the tile; padded rows
    # are computed and discarded in the wrapper.
    row_align = 16 if compute_dtype.itemsize == 2 else 8
    assert block_rows % row_align == 0, "block_rows must be sublane-aligned"
    tm = min(block_rows, _round_up(B, row_align))
    b_pad = _round_up(B, tm)
    if b_pad != B:
        x_c = jnp.pad(x_c, ((0, b_pad - B), (0, 0)))

    out = pl.pallas_call(
        mlp_sp_kernel,
        out_shape=jax.ShapeDtypeStruct((b_pad, O), jnp.float32),
        grid=(b_pad // tm,),
        in_specs=[
            pl.BlockSpec((tm, I), lambda i: (i, 0)),   # x: streamed over batch
            pl.BlockSpec((I, H), lambda i: (0, 0)),    # w1: VMEM-resident
            pl.BlockSpec((1, H), lambda i: (0, 0)),    # b1: VMEM-resident
            pl.BlockSpec((H, O), lambda i: (0, 0)),    # w2: VMEM-resident
            pl.BlockSpec((1, O), lambda i: (0, 0)),    # b2: VMEM-resident
        ],
        out_specs=pl.BlockSpec((tm, O), lambda i: (i, 0)),
        compiler_params=pltpu.CompilerParams(
            dimension_semantics=("parallel",)),        # megacore sharding on v7x
    )(x_c, w1_t, b1_r, w2_t, b2_r)

    return out if b_pad == B else out[:B]


def mlp_sp_reference(x, w1, b1, w2, b2):
    h = jnp.tanh(jnp.asarray(x, jnp.float32) @ w1.T + b1)
    z = h @ w2.T + b2
    return jax.nn.softplus(z)


if __name__ == "__main__":
    # MLP_SP(input_size=32, hidden_size=32, output_size=16)
    input_size, hidden_size, output_size = 32, 32, 16

    key = jax.random.PRNGKey(0)
    kx, kw1, kb1, kw2, kb2 = jax.random.split(key, 5)

    # Deterministic init mimicking nn.Linear defaults: U(-1/sqrt(fan_in), +...).
    bound1 = 1.0 / (input_size ** 0.5)
    bound2 = 1.0 / (hidden_size ** 0.5)
    w1 = jax.random.uniform(kw1, (hidden_size, input_size), jnp.float32, -bound1, bound1)
    b1 = jax.random.uniform(kb1, (hidden_size,), jnp.float32, -bound1, bound1)
    w2 = jax.random.uniform(kw2, (output_size, hidden_size), jnp.float32, -bound2, bound2)
    b2 = jax.random.uniform(kb2, (output_size,), jnp.float32, -bound2, bound2)

    # Case 1: tiny batch (module's micro-shape), f32, single grid step.
    x8 = jax.random.normal(kx, (8, input_size), dtype=jnp.float32)
    out8 = jax.block_until_ready(mlp_sp(x8, w1, b1, w2, b2))
    ref8 = mlp_sp_reference(x8, w1, b1, w2, b2)
    assert out8.shape == (8, output_size)
    assert jnp.allclose(out8, ref8, atol=1e-5, rtol=1e-5), "f32 small-batch mismatch"

    # Case 2: ragged batch + multi-step grid (exercises padding & pipelining), f32.
    x100 = jax.random.normal(kx, (100, input_size), dtype=jnp.float32)
    out100 = jax.block_until_ready(mlp_sp(x100, w1, b1, w2, b2, block_rows=32))
    ref100 = mlp_sp_reference(x100, w1, b1, w2, b2)
    assert out100.shape == (100, output_size)
    assert jnp.allclose(out100, ref100, atol=1e-5, rtol=1e-5), "f32 batched mismatch"

    # Case 3: bf16 inputs/weights (halves HBM traffic on v6e/v7x), f32 accumulation.
    out_bf16 = jax.block_until_ready(
        mlp_sp(x100, w1, b1, w2, b2, block_rows=32, compute_dtype=jnp.bfloat16))
    assert out_bf16.shape == (100, output_size)
    assert jnp.allclose(out_bf16, ref100, atol=5e-2, rtol=5e-2), "bf16 batched mismatch"

    print("KERNEL_OK")
</pallas_src>

<mosaic_0001>
module attributes {stable_mosaic.version = 11 : i64} {
  func.func @mlp_sp_kernel(%arg0: i32, %arg1: memref<8x32xf32, #tpu.memory_space<vmem>>, %arg2: memref<32x32xf32, #tpu.memory_space<vmem>>, %arg3: memref<1x32xf32, #tpu.memory_space<vmem>>, %arg4: memref<32x16xf32, #tpu.memory_space<vmem>>, %arg5: memref<1x16xf32, #tpu.memory_space<vmem>>, %arg6: memref<8x16xf32, #tpu.memory_space<vmem>>) attributes {dimension_semantics = [#tpu.dimension_semantics<parallel>], iteration_bounds = array<i64: 1>, scalar_prefetch = 0 : i64, scratch_operands = 0 : i64, tpu.core_type = #tpu.core_type<tc>, window_params = [{transform_indices = @transform_0, window_bounds = array<i64: 8, 32>}, {pipeline_mode = #tpu.pipeline_mode<synchronous>, transform_indices = @transform_1, window_bounds = array<i64: 32, 32>}, {pipeline_mode = #tpu.pipeline_mode<synchronous>, transform_indices = @transform_2, window_bounds = array<i64: 1, 32>}, {pipeline_mode = #tpu.pipeline_mode<synchronous>, transform_indices = @transform_3, window_bounds = array<i64: 32, 16>}, {pipeline_mode = #tpu.pipeline_mode<synchronous>, transform_indices = @transform_4, window_bounds = array<i64: 1, 16>}, {transform_indices = @transform_5, window_bounds = array<i64: 8, 16>}]} {
    %c0 = arith.constant 0 : index
    %c0_0 = arith.constant 0 : index
    %0 = vector.load %arg1[%c0, %c0_0] : memref<8x32xf32, #tpu.memory_space<vmem>>, vector<8x32xf32>
    %c0_1 = arith.constant 0 : index
    %c0_2 = arith.constant 0 : index
    %1 = vector.load %arg2[%c0_1, %c0_2] : memref<32x32xf32, #tpu.memory_space<vmem>>, vector<32x32xf32>
    %cst = arith.constant dense<0.000000e+00> : vector<8x32xf32>
    %2 = tpu.matmul %0, %1, %cst {dimension_numbers = #tpu.dot_dimension_numbers<[1], [0], [0], [1], [0, 0, 1, 1], [], []>} : vector<8x32xf32>, vector<32x32xf32>, vector<8x32xf32> -> vector<8x32xf32>
    %c0_3 = arith.constant 0 : index
    %c0_4 = arith.constant 0 : index
    %3 = vector.load %arg3[%c0_3, %c0_4] : memref<1x32xf32, #tpu.memory_space<vmem>>, vector<1x32xf32>
    %4 = vector.broadcast %3 : vector<1x32xf32> to vector<8x32xf32>
    %5 = arith.addf %2, %4 : vector<8x32xf32>
    %6 = math.tanh %5 : vector<8x32xf32>
    %c0_5 = arith.constant 0 : index
    %c0_6 = arith.constant 0 : index
    %7 = vector.load %arg4[%c0_5, %c0_6] : memref<32x16xf32, #tpu.memory_space<vmem>>, vector<32x16xf32>
    %cst_7 = arith.constant dense<0.000000e+00> : vector<8x16xf32>
    %8 = tpu.matmul %6, %7, %cst_7 {dimension_numbers = #tpu.dot_dimension_numbers<[1], [0], [0], [1], [0, 0, 1, 1], [], []>} : vector<8x32xf32>, vector<32x16xf32>, vector<8x16xf32> -> vector<8x16xf32>
    %c0_8 = arith.constant 0 : index
    %c0_9 = arith.constant 0 : index
    %9 = vector.load %arg5[%c0_8, %c0_9] : memref<1x16xf32, #tpu.memory_space<vmem>>, vector<1x16xf32>
    %10 = vector.broadcast %9 : vector<1x16xf32> to vector<8x16xf32>
    %11 = arith.addf %8, %10 : vector<8x16xf32>
    %cst_10 = arith.constant 0.000000e+00 : f32
    %12 = vector.broadcast %cst_10 : f32 to vector<8x16xf32>
    %13 = arith.maximumf %11, %12 : vector<8x16xf32>
    %14 = math.absf %11 : vector<8x16xf32>
    %cst_11 = arith.constant 0.000000e+00 : f32
    %15 = vector.broadcast %cst_11 : f32 to vector<8x16xf32>
    %16 = arith.subf %15, %14 : vector<8x16xf32>
    %17 = math.exp %16 : vector<8x16xf32>
    %18 = math.log1p %17 : vector<8x16xf32>
    %19 = arith.addf %13, %18 : vector<8x16xf32>
    %c0_12 = arith.constant 0 : index
    %c0_13 = arith.constant 0 : index
    %20 = vector.load %arg6[%c0_12, %c0_13] : memref<8x16xf32, #tpu.memory_space<vmem>>, vector<8x16xf32>
    tpu.vector_store %arg6[%c0_12, %c0_13], %19 {strides = array<i32>} : memref<8x16xf32, #tpu.memory_space<vmem>>, vector<8x16xf32>,
    return
  }
  func.func @transform_0(%arg0: i32) -> (i32, i32) {
    %c0_i32 = arith.constant 0 : i32
    %c0_i32_0 = arith.constant 0 : i32
    return %arg0, %c0_i32 : i32, i32
  }
  func.func @transform_1(%arg0: i32) -> (i32, i32) {
    %c0_i32 = arith.constant 0 : i32
    %c0_i32_0 = arith.constant 0 : i32
    %c0_i32_1 = arith.constant 0 : i32
    return %c0_i32, %c0_i32_0 : i32, i32
  }
  func.func @transform_2(%arg0: i32) -> (i32, i32) {
    %c0_i32 = arith.constant 0 : i32
    %c0_i32_0 = arith.constant 0 : i32
    %c0_i32_1 = arith.constant 0 : i32
    return %c0_i32, %c0_i32_0 : i32, i32
  }
  func.func @transform_3(%arg0: i32) -> (i32, i32) {
    %c0_i32 = arith.constant 0 : i32
    %c0_i32_0 = arith.constant 0 : i32
    %c0_i32_1 = arith.constant 0 : i32
    return %c0_i32, %c0_i32_0 : i32, i32
  }
  func.func @transform_4(%arg0: i32) -> (i32, i32) {
    %c0_i32 = arith.constant 0 : i32
    %c0_i32_0 = arith.constant 0 : i32
    %c0_i32_1 = arith.constant 0 : i32
    return %c0_i32, %c0_i32_0 : i32, i32
  }
  func.func @transform_5(%arg0: i32) -> (i32, i32) {
    %c0_i32 = arith.constant 0 : i32
    %c0_i32_0 = arith.constant 0 : i32
    return %arg0, %c0_i32 : i32, i32
  }
}

</mosaic_0001>

<llo_original>
// kernel: tpu_custom_call.1
$region0: #{tpu_custom_call.1}
  #allocation0 [shape = 'u32[]', space=smem, size = 0x4, offset = 0x4, fixed_abs, tag = 'smem constant byte address 0x4 - core index']
  #allocation1 [shape = 'u32[144,128]{1,0:T(1,128)}', space=vmem, size = 0x12000, scoped, tag = 'internal scratch']
  %s0 = inlined_call_operand.vmem [shape: f32[8,32], index: 0, kind: input, shape index: {}]
  %s1 = inlined_call_operand.vmem [shape: f32[32,32], index: 1, kind: input, shape index: {}]
  %s2 = inlined_call_operand.vmem [shape: f32[1,32], index: 2, kind: input, shape index: {}]
  %s3 = inlined_call_operand.vmem [shape: f32[32,16], index: 3, kind: input, shape index: {}]
  %s4 = inlined_call_operand.vmem [shape: f32[1,16], index: 4, kind: input, shape index: {}]
  %s5 = inlined_call_operand.hbm [shape: f32[8,16], index: 5, kind: output, shape index: {}]
  %s6 = sld [smem:[#allocation0]]
  $region30: #{tpu_custom_call.1} parent=0
    _
  %s8 = ssub.s32 1, %s6
  %s9 = scalar_select 0, %s8, %s6
  $region1: #{tpu_custom_call.1} parent=0
    #allocation2 [shape = 'u8[4096]{0}', space=vmem, size = 0x1000, scoped, tag = 'output window, operand 0, single buffered']
    #allocation3 [shape = 's32[1]{0}', space=sflag, size = 0x4, scoped, tag = 'scoped memory for tpu_custom_call.1']
    %10 = vsyncpa [#allocation3], 0
    // Predicated region
    $region2: #{tpu_custom_call.1} parent=1 // pred_check
      _
    $region3: #{tpu_custom_call.1} parent=1 // pred_check_branch
      %12 = sbr.rel (0) target = $region5
    $region4: #{tpu_custom_call.1} parent=1 // pred_region
      _
    $region5: #{tpu_custom_call.1} parent=1 // pred_fallthru
      _
    // Predicated region
    $region6: #{tpu_custom_call.1} parent=1 // pred_check
      _
    $region7: #{tpu_custom_call.1} parent=1 // pred_check_branch
      %14 = sbr.rel (0) target = $region9
    $region8: #{tpu_custom_call.1} parent=1 // pred_region
      _
    $region9: #{tpu_custom_call.1} parent=1 // pred_fallthru
      _
    // Predicated region
    $region10: #{tpu_custom_call.1} parent=1 // pred_check
      _
    $region11: #{tpu_custom_call.1} parent=1 // pred_check_branch
      %16 = sbr.rel (0) target = $region13
    $region12: #{tpu_custom_call.1} parent=1 // pred_region
      _
    $region13: #{tpu_custom_call.1} parent=1 // pred_fallthru
      _
    // Predicated region
    $region14: #{tpu_custom_call.1} parent=1 // pred_check
      _
    $region15: #{tpu_custom_call.1} parent=1 // pred_check_branch
      %18 = sbr.rel (0) target = $region17
    $region16: #{tpu_custom_call.1} parent=1 // pred_region
      _
    $region17: #{tpu_custom_call.1} parent=1 // pred_fallthru
      _
    // Predicated region
    $region18: #{tpu_custom_call.1} parent=1 // pred_check
      _
    $region19: #{tpu_custom_call.1} parent=1 // pred_check_branch
      %20 = sbr.rel (0) target = $region21
    $region20: #{tpu_custom_call.1} parent=1 // pred_region
      _
    $region21: #{tpu_custom_call.1} parent=1 // pred_fallthru
      _
    %v21 = vld [vmem:[%s0] sm:$0xff]
    %v22 = vld [vmem:[%s1] sm:$0xff]
    %v23 = vld [vmem:[%s1 + $0x8] sm:$0xff]
    %v24 = vld [vmem:[%s1 + $0x10] sm:$0xff]
    %v25 = vld [vmem:[%s1 + $0x18] sm:$0xff]
    %v26 = vld [vmem:[%s2] sm:$0x1]
    %v28 = vlaneseq
    %v29 = vshrl.u32 %v28, 7
    %v30 = vsub.s32 0, %v29
    %v31 = vrot.slane %v26, %v30
    %vm33 = vcmask 261120
    %v35 = vsel %vm33, %v21, 0
    %37 = vmatprep.subr.mxu0 0.0
    %38 = vmatpush1.msra.mxu0 %v22
    %39 = vmatprep.subr.mxu0 0.0
    %40 = vmatpush1.msra.mxu0 %v23
    %41 = vmatprep.subr.mxu0 0.0
    %42 = vmatpush1.msra.mxu0 %v24
    %43 = vmatprep.subr.mxu0 0.0
    %44 = vmatpush1.msra.mxu0 %v25
    %45 = vmatprep.subr.mxu0 0.0
    %46 = vmatpush1.msra.mxu0 0.0
    %47 = vmatprep.subr.mxu0 0.0
    %48 = vmatpush1.msra.mxu0 0.0
    %49 = vmatprep.subr.mxu0 0.0
    %50 = vmatpush1.msra.mxu0 0.0
    %51 = vmatprep.subr.mxu0 0.0
    %52 = vmatpush1.msra.mxu0 0.0
    %53 = vmatprep.subr.mxu0 0.0
    %54 = vmatpush1.msra.mxu0 0.0
    %55 = vmatprep.subr.mxu0 0.0
    %56 = vmatpush1.msra.mxu0 0.0
    %57 = vmatprep.subr.mxu0 0.0
    %58 = vmatpush1.msra.mxu0 0.0
    %59 = vmatprep.subr.mxu0 0.0
    %60 = vmatpush1.msra.mxu0 0.0
    %61 = vmatprep.subr.mxu0 0.0
    %62 = vmatpush1.msra.mxu0 0.0
    %63 = vmatprep.subr.mxu0 0.0
    %64 = vmatpush1.msra.mxu0 0.0
    %65 = vmatprep.subr.mxu0 0.0
    %66 = vmatpush1.msra.mxu0 0.0
    %67 = vmatprep.subr.mxu0 0.0
    %68 = vmatpush1.msra.mxu0 0.0
    %69 = vmatprep.subr.mxu0 0.0
    %70 = vmatpush1.msra.mxu0 0.0
    %71 = vmatprep.subr.mxu0 0.0
    %72 = vmatpush1.msra.mxu0 0.0
    %73 = vmatprep.subr.mxu0 0.0
    %74 = vmatpush1.msra.mxu0 0.0
    %75 = vmatprep.subr.mxu0 0.0
    %76 = vmatpush1.msra.mxu0 0.0
    %77 = vmatprep.subr.mxu0 0.0
    %78 = vmatpush1.msra.mxu0 0.0
    %79 = vmatprep.subr.mxu0 0.0
    %80 = vmatpush1.msra.mxu0 0.0
    %81 = vmatprep.subr.mxu0 0.0
    %82 = vmatpush1.msra.mxu0 0.0
    %83 = vmatprep.subr.mxu0 0.0
    %84 = vmatpush1.msra.mxu0 0.0
    %85 = vmatprep.subr.mxu0 0.0
    %86 = vmatpush1.msra.mxu0 0.0
    %87 = vmatprep.subr.mxu0 0.0
    %88 = vmatpush1.msra.mxu0 0.0
    %89 = vmatprep.subr.mxu0 0.0
    %90 = vmatpush1.msra.mxu0 0.0
    %91 = vmatprep.subr.mxu0 0.0
    %92 = vmatpush1.msra.mxu0 0.0
    %93 = vmatprep.subr.mxu0 0.0
    %94 = vmatpush1.msra.mxu0 0.0
    %95 = vmatprep.subr.mxu0 0.0
    %96 = vmatpush1.msra.mxu0 0.0
    %97 = vmatprep.subr.mxu0 0.0
    %98 = vmatpush1.msra.mxu0 0.0
    %99 = vmatprep.subr.mxu0 0.0
    %100 = vmatpush1.msra.mxu0 0.0
    %101 = vmatprep.mubr.f32.mxu0 0.0
    %102 = vmatmul.mubr.f32.gmra.mrb[0].mxu0 %v35
    %v103 = vpop.f32.mrb[0].mxu0
    %v104 = vadd.f32 %v31, %v103
    %v105 = vpop.f32.mrb[0].mxu0
    %106 = vdwg.mxu0
    %v107 = vtanh.pop %v104
    %v108 = vld [vmem:[%s3] sm:$0xff]
    %v109 = vld [vmem:[%s3 + $0x8] sm:$0xff]
    %v110 = vld [vmem:[%s3 + $0x10] sm:$0xff]
    %v111 = vld [vmem:[%s3 + $0x18] sm:$0xff]
    %v112 = vld [vmem:[%s4] sm:$0x1]
    %v114 = vlaneseq
    %v115 = vshrl.u32 %v114, 7
    %v116 = vsub.s32 0, %v115
    %v117 = vrot.slane %v112, %v116
    %v120 = vsel %vm33, %v107, 0
    %122 = vmatprep.subr.mxu0 0.0
    %123 = vmatpush1.msra.mxu0 %v108
    %124 = vmatprep.subr.mxu0 0.0
    %125 = vmatpush1.msra.mxu0 %v109
    %126 = vmatprep.subr.mxu0 0.0
    %127 = vmatpush1.msra.mxu0 %v110
    %128 = vmatprep.subr.mxu0 0.0
    %129 = vmatpush1.msra.mxu0 %v111
    %130 = vmatprep.subr.mxu0 0.0
    %131 = vmatpush1.msra.mxu0 0.0
    %132 = vmatprep.subr.mxu0 0.0
    %133 = vmatpush1.msra.mxu0 0.0
    %134 = vmatprep.subr.mxu0 0.0
    %135 = vmatpush1.msra.mxu0 0.0
    %136 = vmatprep.subr.mxu0 0.0
    %137 = vmatpush1.msra.mxu0 0.0
    %138 = vmatprep.subr.mxu0 0.0
    %139 = vmatpush1.msra.mxu0 0.0
    %140 = vmatprep.subr.mxu0 0.0
    %141 = vmatpush1.msra.mxu0 0.0
    %142 = vmatprep.subr.mxu0 0.0
    %143 = vmatpush1.msra.mxu0 0.0
    %144 = vmatprep.subr.mxu0 0.0
    %145 = vmatpush1.msra.mxu0 0.0
    %146 = vmatprep.subr.mxu0 0.0
    %147 = vmatpush1.msra.mxu0 0.0
    %148 = vmatprep.subr.mxu0 0.0
    %149 = vmatpush1.msra.mxu0 0.0
    %150 = vmatprep.subr.mxu0 0.0
    %151 = vmatpush1.msra.mxu0 0.0
    %152 = vmatprep.subr.mxu0 0.0
    %153 = vmatpush1.msra.mxu0 0.0
    %154 = vmatprep.subr.mxu0 0.0
    %155 = vmatpush1.msra.mxu0 0.0
    %156 = vmatprep.subr.mxu0 0.0
    %157 = vmatpush1.msra.mxu0 0.0
    %158 = vmatprep.subr.mxu0 0.0
    %159 = vmatpush1.msra.mxu0 0.0
    %160 = vmatprep.subr.mxu0 0.0
    %161 = vmatpush1.msra.mxu0 0.0
    %162 = vmatprep.subr.mxu0 0.0
    %163 = vmatpush1.msra.mxu0 0.0
    %164 = vmatprep.subr.mxu0 0.0
    %165 = vmatpush1.msra.mxu0 0.0
    %166 = vmatprep.subr.mxu0 0.0
    %167 = vmatpush1.msra.mxu0 0.0
    %168 = vmatprep.subr.mxu0 0.0
    %169 = vmatpush1.msra.mxu0 0.0
    %170 = vmatprep.subr.mxu0 0.0
    %171 = vmatpush1.msra.mxu0 0.0
    %172 = vmatprep.subr.mxu0 0.0
    %173 = vmatpush1.msra.mxu0 0.0
    %174 = vmatprep.subr.mxu0 0.0
    %175 = vmatpush1.msra.mxu0 0.0
    %176 = vmatprep.subr.mxu0 0.0
    %177 = vmatpush1.msra.mxu0 0.0
    %178 = vmatprep.subr.mxu0 0.0
    %179 = vmatpush1.msra.mxu0 0.0
    %180 = vmatprep.subr.mxu0 0.0
    %181 = vmatpush1.msra.mxu0 0.0
    %182 = vmatprep.subr.mxu0 0.0
    %183 = vmatpush1.msra.mxu0 0.0
    %184 = vmatprep.subr.mxu0 0.0
    %185 = vmatpush1.msra.mxu0 0.0
    %186 = vmatprep.mubr.f32.mxu0 0.0
    %187 = vmatmul.mubr.f32.gmra.mrb[0].mxu0 %v120
    %v188 = vpop.f32.mrb[0].mxu0
    %v189 = vadd.f32 %v117, %v188
    %v190 = vpop.f32.mrb[0].mxu0
    %191 = vdwg.mxu0
    %v192 = vmax.f32 %v189, 0.0
    %v193 = vand.u32 2147483647, %v189
    %v194 = vsub.f32 0.0, %v193
    %v195 = vmul.f32 %v194, 1.442695
    %v196 = vpow.pop %v195
    %v197 = vadd.f32 %v196, 1.0
    %v198 = vlog2.pop %v197
    %v199 = vmul.f32 %v198, 0.6931472
    %v200 = vmul.f32 -0.5, %v196
    %v201 = vadd.f32 %v200, 1.0
    %v202 = vmul.f32 %v201, %v196
    %v203 = vand.u32 2147483647, %v196
    %vm204 = vcmp.lt.f32.partialorder %v203, 0.0004427343
    %v205 = vsel %vm204, %v202, %v199
    %v206 = vadd.f32 %v192, %v205
    %vm207 = vcmask 130048
    %208 = vst.msk [vmem:[#allocation2] sm:$0xff] %vm207, %v206
    // Predicated region
    $region22: #{tpu_custom_call.1} parent=1 // pred_check
      _
    $region23: #{tpu_custom_call.1} parent=1 // pred_check_branch
      %210 = sbr.rel (0) target = $region25
    $region24: #{tpu_custom_call.1} parent=1 // pred_region
      %s212 = ssub.s32 128, 128
      %213 = vsyncadd [#allocation3], %s212
      %s215 = sshll.u32 [#allocation2], 4
      %s216 = int_to_ptr.vmem [resolvable:$true] %s215
      %218 = dma.vmem_to_hbm [thread:$0]  %s216, 128, %s5, [#allocation3]
    $region25: #{tpu_custom_call.1} parent=1 // pred_fallthru
      _
    // Predicated region
    $region26: #{tpu_custom_call.1} parent=1 // pred_check
      _
    $region27: #{tpu_custom_call.1} parent=1 // pred_check_branch
      %220 = sbr.rel (0) target = $region29
    $region28: #{tpu_custom_call.1} parent=1 // pred_region
      %221 = dma.done [#allocation3], 128
    $region29: #{tpu_custom_call.1} parent=1 // pred_fallthru
      _
    %222 = vsyncpa [#allocation3], 1

</llo_original>
